<compile_context>
chip_gen: v7x
topology: tpu7x:2x2x1
jax: 0.10.0
libtpu: 0.0.40
codegen_flags: <defaults>
</compile_context>

<pallas_src>
import jax
import jax.numpy as jnp
from jax.experimental import pallas as pl
from jax.experimental.pallas import tpu as pltpu


MIN_LOG_STD = -10.0  # dead after the ReLU on the log_std head (kept for doc parity)
MAX_LOG_STD = 10.0


def actor_net_kernel(x_ref, w1_ref, b1_ref, wh_ref, bh_ref, mu_ref, ls_ref):
    # fc1 + ReLU (accumulate in f32; operands may be bf16)
    w1 = w1_ref[...]
    h = jnp.dot(x_ref[...].astype(w1.dtype), w1,
                preferred_element_type=jnp.float32) + b1_ref[...]
    h = jnp.maximum(h, 0.0)

    # fused heads: one matmul produces [mu | log_std_raw] side by side
    wh = wh_ref[...]
    y = jnp.dot(h.astype(wh.dtype), wh,
                preferred_element_type=jnp.float32) + bh_ref[...]

    a = mu_ref.shape[-1]
    mu_ref[...] = y[:, :a].astype(mu_ref.dtype)

    # log_std head: ReLU then upper clamp (the -10 lower clamp is dead after ReLU).
    ls = jnp.minimum(jnp.maximum(y[:, a:], 0.0), MAX_LOG_STD)
    ls_ref[...] = ls.astype(ls_ref.dtype)


def prepare_params(params, *, matmul_dtype=jnp.float32):
    """Fuse the two head weights into one slab once (outside the per-call path)
    and optionally cast matmul operands (e.g. bf16 on v6e/v7x).  Biases stay f32."""
    w_head = jnp.concatenate([params["w_mu"], params["w_ls"]], axis=1)   # (H, 2A)
    b_head = jnp.concatenate([params["b_mu"], params["b_ls"]], axis=1)   # (1, 2A)
    return {
        "w1": params["w1"].astype(matmul_dtype),
        "b1": params["b1"].astype(jnp.float32),
        "w_head": w_head.astype(matmul_dtype),
        "b_head": b_head.astype(jnp.float32),
    }


def _round_up(v, m):
    return ((v + m - 1) // m) * m


def actor_net_forward(x, fused_params, *, max_block_rows=4096, min_grid_steps=2):
    """x: (B, state_dim) float32. fused_params: output of prepare_params.
    Returns (mu, log_std), each (B, action_dim) float32."""
    B, state_dim = x.shape
    hidden = fused_params["w1"].shape[1]
    two_a = fused_params["w_head"].shape[1]
    action_dim = two_a // 2

    # Row tile: multiple of 8 (sublane), capped at max_block_rows, and small
    # enough (when B allows) to give >= min_grid_steps grid steps so the
    # "parallel" batch axis can shard across both TensorCores on v7x.
    tb = _round_up(max(1, -(-B // min_grid_steps)), 8)
    tb = max(8, min(tb, max_block_rows))

    grid = (pl.cdiv(B, tb),)  # ragged last block handled by Pallas store masking

    mu, log_std = pl.pallas_call(
        actor_net_kernel,
        out_shape=(
            jax.ShapeDtypeStruct((B, action_dim), jnp.float32),
            jax.ShapeDtypeStruct((B, action_dim), jnp.float32),
        ),
        grid=grid,
        in_specs=[
            # activations: blocked on rows
            pl.BlockSpec((tb, state_dim), lambda i: (i, 0)),
            # parameters: constant index_map -> stay resident in VMEM
            pl.BlockSpec((state_dim, hidden), lambda i: (0, 0)),
            pl.BlockSpec((1, hidden), lambda i: (0, 0)),
            pl.BlockSpec((hidden, two_a), lambda i: (0, 0)),
            pl.BlockSpec((1, two_a), lambda i: (0, 0)),
        ],
        out_specs=(
            pl.BlockSpec((tb, action_dim), lambda i: (i, 0)),
            pl.BlockSpec((tb, action_dim), lambda i: (i, 0)),
        ),
        compiler_params=pltpu.CompilerParams(
            dimension_semantics=("parallel",),  # shard batch across TCs on v7x
        ),
    )(x, fused_params["w1"], fused_params["b1"],
      fused_params["w_head"], fused_params["b_head"])

    return mu, log_std


def init_params(key, state_dim, action_dim, hidden_sizes=128):
    """Deterministic synthetic parameters (PyTorch-Linear-like uniform init)."""
    ks = jax.random.split(key, 6)

    def uniform(k, shape, fan_in):
        bound = 1.0 / jnp.sqrt(jnp.float32(fan_in))
        return jax.random.uniform(k, shape, jnp.float32, -bound, bound)

    return {
        # stored as (in, out); biases as (1, out) so they broadcast over batch
        "w1":   uniform(ks[0], (state_dim, hidden_sizes), state_dim),
        "b1":   uniform(ks[1], (1, hidden_sizes), state_dim),
        "w_mu": uniform(ks[2], (hidden_sizes, action_dim), hidden_sizes),
        "b_mu": uniform(ks[3], (1, action_dim), hidden_sizes),
        "w_ls": uniform(ks[4], (hidden_sizes, action_dim), hidden_sizes),
        "b_ls": uniform(ks[5], (1, action_dim), hidden_sizes),
    }


def reference_forward(x, params):
    """Pure-JAX reference matching the PyTorch forward exactly."""
    h = jnp.maximum(x @ params["w1"] + params["b1"], 0.0)
    mu = h @ params["w_mu"] + params["b_mu"]
    ls = jnp.maximum(h @ params["w_ls"] + params["b_ls"], 0.0)
    ls = jnp.clip(ls, MIN_LOG_STD, MAX_LOG_STD)
    return mu, ls


if __name__ == "__main__":
    key = jax.random.PRNGKey(0)
    k_param, k_x = jax.random.split(key)

    batch = 2
    state_dim = 16
    action_dim = 8
    hidden = 128

    params = init_params(k_param, state_dim, action_dim, hidden)
    fused = prepare_params(params)  # f32 matmul operands (strict check below)

    x = jax.random.normal(k_x, (batch, state_dim), jnp.float32)

    mu, log_std = actor_net_forward(x, fused)
    jax.block_until_ready((mu, log_std))

    mu_ref, ls_ref = reference_forward(x, params)
    assert mu.shape == (batch, action_dim) and log_std.shape == (batch, action_dim)
    assert jnp.allclose(mu, mu_ref, atol=1e-5, rtol=1e-5)
    assert jnp.allclose(log_std, ls_ref, atol=1e-5, rtol=1e-5)

    # Larger batch, not a multiple of the row tile -> exercises the ragged last
    # block (no wrapper padding) and the >=2-grid-step (megacore) path.
    big_b = 1040
    xb = jax.random.normal(jax.random.PRNGKey(1), (big_b, state_dim), jnp.float32)
    mu_b, ls_b = actor_net_forward(xb, fused)
    jax.block_until_ready((mu_b, ls_b))
    mu_br, ls_br = reference_forward(xb, params)
    assert jnp.allclose(mu_b, mu_br, atol=1e-5, rtol=1e-5)
    assert jnp.allclose(ls_b, ls_br, atol=1e-5, rtol=1e-5)

    # Optional bf16 matmul-operand path (MXU-native on v6e/v7x); looser tolerance.
    fused_bf16 = prepare_params(params, matmul_dtype=jnp.bfloat16)
    mu_h, ls_h = actor_net_forward(xb, fused_bf16)
    jax.block_until_ready((mu_h, ls_h))
    assert jnp.allclose(mu_h, mu_br, atol=3e-2, rtol=3e-2)
    assert jnp.allclose(ls_h, ls_br, atol=3e-2, rtol=3e-2)

    print("KERNEL_OK")
</pallas_src>

<mosaic_0001>
module attributes {stable_mosaic.version = 11 : i64} {
  func.func @actor_net_kernel(%arg0: i32, %arg1: memref<8x16xf32, #tpu.memory_space<vmem>>, %arg2: memref<16x128xf32, #tpu.memory_space<vmem>>, %arg3: memref<1x128xf32, #tpu.memory_space<vmem>>, %arg4: memref<128x16xf32, #tpu.memory_space<vmem>>, %arg5: memref<1x16xf32, #tpu.memory_space<vmem>>, %arg6: memref<8x8xf32, #tpu.memory_space<vmem>>, %arg7: memref<8x8xf32, #tpu.memory_space<vmem>>) attributes {dimension_semantics = [#tpu.dimension_semantics<parallel>], iteration_bounds = array<i64: 1>, scalar_prefetch = 0 : i64, scratch_operands = 0 : i64, tpu.core_type = #tpu.core_type<tc>, window_params = [{transform_indices = @transform_0, window_bounds = array<i64: 8, 16>}, {pipeline_mode = #tpu.pipeline_mode<synchronous>, transform_indices = @transform_1, window_bounds = array<i64: 16, 128>}, {pipeline_mode = #tpu.pipeline_mode<synchronous>, transform_indices = @transform_2, window_bounds = array<i64: 1, 128>}, {pipeline_mode = #tpu.pipeline_mode<synchronous>, transform_indices = @transform_3, window_bounds = array<i64: 128, 16>}, {pipeline_mode = #tpu.pipeline_mode<synchronous>, transform_indices = @transform_4, window_bounds = array<i64: 1, 16>}, {transform_indices = @transform_5, window_bounds = array<i64: 8, 8>}, {transform_indices = @transform_6, window_bounds = array<i64: 8, 8>}]} {
    %c0 = arith.constant 0 : index
    %c0_0 = arith.constant 0 : index
    %0 = vector.load %arg2[%c0, %c0_0] : memref<16x128xf32, #tpu.memory_space<vmem>>, vector<16x128xf32>
    %c0_1 = arith.constant 0 : index
    %c0_2 = arith.constant 0 : index
    %1 = vector.load %arg1[%c0_1, %c0_2] : memref<8x16xf32, #tpu.memory_space<vmem>>, vector<8x16xf32>
    %cst = arith.constant dense<0.000000e+00> : vector<8x128xf32>
    %2 = tpu.matmul %1, %0, %cst {dimension_numbers = #tpu.dot_dimension_numbers<[1], [0], [0], [1], [0, 0, 1, 1], [], []>} : vector<8x16xf32>, vector<16x128xf32>, vector<8x128xf32> -> vector<8x128xf32>
    %c0_3 = arith.constant 0 : index
    %c0_4 = arith.constant 0 : index
    %3 = vector.load %arg3[%c0_3, %c0_4] : memref<1x128xf32, #tpu.memory_space<vmem>>, vector<1x128xf32>
    %4 = vector.broadcast %3 : vector<1x128xf32> to vector<8x128xf32>
    %5 = arith.addf %2, %4 : vector<8x128xf32>
    %cst_5 = arith.constant 0.000000e+00 : f32
    %6 = vector.broadcast %cst_5 : f32 to vector<8x128xf32>
    %7 = arith.maximumf %5, %6 : vector<8x128xf32>
    %c0_6 = arith.constant 0 : index
    %c0_7 = arith.constant 0 : index
    %8 = vector.load %arg4[%c0_6, %c0_7] : memref<128x16xf32, #tpu.memory_space<vmem>>, vector<128x16xf32>
    %cst_8 = arith.constant dense<0.000000e+00> : vector<8x16xf32>
    %9 = tpu.matmul %7, %8, %cst_8 {dimension_numbers = #tpu.dot_dimension_numbers<[1], [0], [0], [1], [0, 0, 1, 1], [], []>} : vector<8x128xf32>, vector<128x16xf32>, vector<8x16xf32> -> vector<8x16xf32>
    %c0_9 = arith.constant 0 : index
    %c0_10 = arith.constant 0 : index
    %10 = vector.load %arg5[%c0_9, %c0_10] : memref<1x16xf32, #tpu.memory_space<vmem>>, vector<1x16xf32>
    %11 = vector.broadcast %10 : vector<1x16xf32> to vector<8x16xf32>
    %12 = arith.addf %9, %11 : vector<8x16xf32>
    %13 = vector.extract_strided_slice %12 {offsets = [0, 0], sizes = [8, 8], strides = [1, 1]} : vector<8x16xf32> to vector<8x8xf32>
    %c0_11 = arith.constant 0 : index
    %c0_12 = arith.constant 0 : index
    %14 = vector.load %arg6[%c0_11, %c0_12] : memref<8x8xf32, #tpu.memory_space<vmem>>, vector<8x8xf32>
    tpu.vector_store %arg6[%c0_11, %c0_12], %13 {strides = array<i32>} : memref<8x8xf32, #tpu.memory_space<vmem>>, vector<8x8xf32>,
    %15 = vector.extract_strided_slice %12 {offsets = [0, 8], sizes = [8, 8], strides = [1, 1]} : vector<8x16xf32> to vector<8x8xf32>
    %cst_13 = arith.constant 0.000000e+00 : f32
    %16 = vector.broadcast %cst_13 : f32 to vector<8x8xf32>
    %17 = arith.maximumf %15, %16 : vector<8x8xf32>
    %cst_14 = arith.constant 1.000000e+01 : f32
    %18 = vector.broadcast %cst_14 : f32 to vector<8x8xf32>
    %19 = arith.minimumf %17, %18 : vector<8x8xf32>
    %c0_15 = arith.constant 0 : index
    %c0_16 = arith.constant 0 : index
    %20 = vector.load %arg7[%c0_15, %c0_16] : memref<8x8xf32, #tpu.memory_space<vmem>>, vector<8x8xf32>
    tpu.vector_store %arg7[%c0_15, %c0_16], %19 {strides = array<i32>} : memref<8x8xf32, #tpu.memory_space<vmem>>, vector<8x8xf32>,
    return
  }
  func.func @transform_0(%arg0: i32) -> (i32, i32) {
    %c0_i32 = arith.constant 0 : i32
    %c0_i32_0 = arith.constant 0 : i32
    return %arg0, %c0_i32 : i32, i32
  }
  func.func @transform_1(%arg0: i32) -> (i32, i32) {
    %c0_i32 = arith.constant 0 : i32
    %c0_i32_0 = arith.constant 0 : i32
    %c0_i32_1 = arith.constant 0 : i32
    return %c0_i32, %c0_i32_0 : i32, i32
  }
  func.func @transform_2(%arg0: i32) -> (i32, i32) {
    %c0_i32 = arith.constant 0 : i32
    %c0_i32_0 = arith.constant 0 : i32
    %c0_i32_1 = arith.constant 0 : i32
    return %c0_i32, %c0_i32_0 : i32, i32
  }
  func.func @transform_3(%arg0: i32) -> (i32, i32) {
    %c0_i32 = arith.constant 0 : i32
    %c0_i32_0 = arith.constant 0 : i32
    %c0_i32_1 = arith.constant 0 : i32
    return %c0_i32, %c0_i32_0 : i32, i32
  }
  func.func @transform_4(%arg0: i32) -> (i32, i32) {
    %c0_i32 = arith.constant 0 : i32
    %c0_i32_0 = arith.constant 0 : i32
    %c0_i32_1 = arith.constant 0 : i32
    return %c0_i32, %c0_i32_0 : i32, i32
  }
  func.func @transform_5(%arg0: i32) -> (i32, i32) {
    %c0_i32 = arith.constant 0 : i32
    %c0_i32_0 = arith.constant 0 : i32
    return %arg0, %c0_i32 : i32, i32
  }
  func.func @transform_6(%arg0: i32) -> (i32, i32) {
    %c0_i32 = arith.constant 0 : i32
    %c0_i32_0 = arith.constant 0 : i32
    return %arg0, %c0_i32 : i32, i32
  }
}

</mosaic_0001>

<llo_original>
// kernel: tpu_custom_call.1
$region0: #{tpu_custom_call.1}
  #allocation0 [shape = 'u32[]', space=smem, size = 0x4, offset = 0x4, fixed_abs, tag = 'smem constant byte address 0x4 - core index']
  #allocation1 [shape = 'u32[144,128]{1,0:T(1,128)}', space=vmem, size = 0x12000, scoped, tag = 'internal scratch']
  %s0 = inlined_call_operand.vmem [shape: f32[2,16], index: 0, kind: input, shape index: {}]
  %s1 = inlined_call_operand.vmem [shape: f32[16,128], index: 1, kind: input, shape index: {}]
  %s2 = inlined_call_operand.vmem [shape: f32[1,128], index: 2, kind: input, shape index: {}]
  %s3 = inlined_call_operand.vmem [shape: f32[128,16], index: 3, kind: input, shape index: {}]
  %s4 = inlined_call_operand.vmem [shape: f32[1,16], index: 4, kind: input, shape index: {}]
  %s5 = inlined_call_operand.hbm [shape: f32[2,8], index: 5, kind: output, shape index: {0}]
  %s6 = inlined_call_operand.hbm [shape: f32[2,8], index: 6, kind: output, shape index: {1}]
  %7 = xla_tuple %s5, %s6
  %s8 = sld [smem:[#allocation0]]
  $region38: #{tpu_custom_call.1} parent=0
    _
  %s10 = ssub.s32 1, %s8
  %s11 = scalar_select 0, %s10, %s8
  $region1: #{tpu_custom_call.1} parent=0
    #allocation2 [shape = 'u8[4096]{0}', space=vmem, size = 0x1000, scoped, tag = 'output window, operand 0, single buffered']
    #allocation3 [shape = 's32[1]{0}', space=sflag, size = 0x4, scoped, tag = 'scoped memory for tpu_custom_call.1']
    #allocation4 [shape = 'u8[4096]{0}', space=vmem, size = 0x1000, scoped, tag = 'output window, operand 1, single buffered']
    #allocation5 [shape = 's32[1]{0}', space=sflag, size = 0x4, scoped, tag = 'scoped memory for tpu_custom_call.1']
    %12 = vsyncpa [#allocation3], 0
    %13 = vsyncpa [#allocation5], 0
    // Predicated region
    $region2: #{tpu_custom_call.1} parent=1 // pred_check
      _
    $region3: #{tpu_custom_call.1} parent=1 // pred_check_branch
      %15 = sbr.rel (0) target = $region5
    $region4: #{tpu_custom_call.1} parent=1 // pred_region
      _
    $region5: #{tpu_custom_call.1} parent=1 // pred_fallthru
      _
    // Predicated region
    $region6: #{tpu_custom_call.1} parent=1 // pred_check
      _
    $region7: #{tpu_custom_call.1} parent=1 // pred_check_branch
      %17 = sbr.rel (0) target = $region9
    $region8: #{tpu_custom_call.1} parent=1 // pred_region
      _
    $region9: #{tpu_custom_call.1} parent=1 // pred_fallthru
      _
    // Predicated region
    $region10: #{tpu_custom_call.1} parent=1 // pred_check
      _
    $region11: #{tpu_custom_call.1} parent=1 // pred_check_branch
      %19 = sbr.rel (0) target = $region13
    $region12: #{tpu_custom_call.1} parent=1 // pred_region
      _
    $region13: #{tpu_custom_call.1} parent=1 // pred_fallthru
      _
    // Predicated region
    $region14: #{tpu_custom_call.1} parent=1 // pred_check
      _
    $region15: #{tpu_custom_call.1} parent=1 // pred_check_branch
      %21 = sbr.rel (0) target = $region17
    $region16: #{tpu_custom_call.1} parent=1 // pred_region
      _
    $region17: #{tpu_custom_call.1} parent=1 // pred_fallthru
      _
    // Predicated region
    $region18: #{tpu_custom_call.1} parent=1 // pred_check
      _
    $region19: #{tpu_custom_call.1} parent=1 // pred_check_branch
      %23 = sbr.rel (0) target = $region21
    $region20: #{tpu_custom_call.1} parent=1 // pred_region
      _
    $region21: #{tpu_custom_call.1} parent=1 // pred_fallthru
      _
    %v24 = vld [vmem:[%s1] sm:$0xff]
    %v25 = vld [vmem:[%s1 + $0x8] sm:$0xff]
    %v26 = vld [vmem:[%s0] sm:$0xff]
    %v27 = vld [vmem:[%s2] sm:$0x1]
    %v29 = vlaneseq
    %v30 = vshrl.u32 %v29, 7
    %v31 = vsub.s32 0, %v30
    %v32 = vrot.slane %v27, %v31
    %vm34 = vcmask 130048
    %v36 = vsel %vm34, %v26, 0
    %38 = vmatprep.subr.mxu0 0.0
    %39 = vmatpush1.msra.mxu0 %v24
    %40 = vmatprep.subr.mxu0 0.0
    %41 = vmatpush1.msra.mxu0 %v25
    %42 = vmatprep.subr.mxu0 0.0
    %43 = vmatpush1.msra.mxu0 0.0
    %44 = vmatprep.subr.mxu0 0.0
    %45 = vmatpush1.msra.mxu0 0.0
    %46 = vmatprep.subr.mxu0 0.0
    %47 = vmatpush1.msra.mxu0 0.0
    %48 = vmatprep.subr.mxu0 0.0
    %49 = vmatpush1.msra.mxu0 0.0
    %50 = vmatprep.subr.mxu0 0.0
    %51 = vmatpush1.msra.mxu0 0.0
    %52 = vmatprep.subr.mxu0 0.0
    %53 = vmatpush1.msra.mxu0 0.0
    %54 = vmatprep.subr.mxu0 0.0
    %55 = vmatpush1.msra.mxu0 0.0
    %56 = vmatprep.subr.mxu0 0.0
    %57 = vmatpush1.msra.mxu0 0.0
    %58 = vmatprep.subr.mxu0 0.0
    %59 = vmatpush1.msra.mxu0 0.0
    %60 = vmatprep.subr.mxu0 0.0
    %61 = vmatpush1.msra.mxu0 0.0
    %62 = vmatprep.subr.mxu0 0.0
    %63 = vmatpush1.msra.mxu0 0.0
    %64 = vmatprep.subr.mxu0 0.0
    %65 = vmatpush1.msra.mxu0 0.0
    %66 = vmatprep.subr.mxu0 0.0
    %67 = vmatpush1.msra.mxu0 0.0
    %68 = vmatprep.subr.mxu0 0.0
    %69 = vmatpush1.msra.mxu0 0.0
    %70 = vmatprep.subr.mxu0 0.0
    %71 = vmatpush1.msra.mxu0 0.0
    %72 = vmatprep.subr.mxu0 0.0
    %73 = vmatpush1.msra.mxu0 0.0
    %74 = vmatprep.subr.mxu0 0.0
    %75 = vmatpush1.msra.mxu0 0.0
    %76 = vmatprep.subr.mxu0 0.0
    %77 = vmatpush1.msra.mxu0 0.0
    %78 = vmatprep.subr.mxu0 0.0
    %79 = vmatpush1.msra.mxu0 0.0
    %80 = vmatprep.subr.mxu0 0.0
    %81 = vmatpush1.msra.mxu0 0.0
    %82 = vmatprep.subr.mxu0 0.0
    %83 = vmatpush1.msra.mxu0 0.0
    %84 = vmatprep.subr.mxu0 0.0
    %85 = vmatpush1.msra.mxu0 0.0
    %86 = vmatprep.subr.mxu0 0.0
    %87 = vmatpush1.msra.mxu0 0.0
    %88 = vmatprep.subr.mxu0 0.0
    %89 = vmatpush1.msra.mxu0 0.0
    %90 = vmatprep.subr.mxu0 0.0
    %91 = vmatpush1.msra.mxu0 0.0
    %92 = vmatprep.subr.mxu0 0.0
    %93 = vmatpush1.msra.mxu0 0.0
    %94 = vmatprep.subr.mxu0 0.0
    %95 = vmatpush1.msra.mxu0 0.0
    %96 = vmatprep.subr.mxu0 0.0
    %97 = vmatpush1.msra.mxu0 0.0
    %98 = vmatprep.subr.mxu0 0.0
    %99 = vmatpush1.msra.mxu0 0.0
    %100 = vmatprep.subr.mxu0 0.0
    %101 = vmatpush1.msra.mxu0 0.0
    %102 = vmatprep.mubr.f32.mxu0 0.0
    %103 = vmatmul.mubr.f32.gmra.mrb[0].mxu0 %v36
    %v104 = vpop.f32.mrb[0].mxu0
    %v105 = vadd.f32 %v32, %v104
    %v106 = vpop.f32.mrb[0].mxu0
    %107 = vdwg.mxu0
    %v108 = vmax.f32 %v105, 0.0
    %v109 = vld [vmem:[%s3] sm:$0xff]
    %v110 = vld [vmem:[%s3 + $0x8] sm:$0xff]
    %v111 = vld [vmem:[%s3 + $0x10] sm:$0xff]
    %v112 = vld [vmem:[%s3 + $0x18] sm:$0xff]
    %v113 = vld [vmem:[%s3 + $0x20] sm:$0xff]
    %v114 = vld [vmem:[%s3 + $0x28] sm:$0xff]
    %v115 = vld [vmem:[%s3 + $0x30] sm:$0xff]
    %v116 = vld [vmem:[%s3 + $0x38] sm:$0xff]
    %v117 = vld [vmem:[%s3 + $0x40] sm:$0xff]
    %v118 = vld [vmem:[%s3 + $0x48] sm:$0xff]
    %v119 = vld [vmem:[%s3 + $0x50] sm:$0xff]
    %v120 = vld [vmem:[%s3 + $0x58] sm:$0xff]
    %v121 = vld [vmem:[%s3 + $0x60] sm:$0xff]
    %v122 = vld [vmem:[%s3 + $0x68] sm:$0xff]
    %v123 = vld [vmem:[%s3 + $0x70] sm:$0xff]
    %v124 = vld [vmem:[%s3 + $0x78] sm:$0xff]
    %v125 = vld [vmem:[%s4] sm:$0x1]
    %v127 = vlaneseq
    %v128 = vshrl.u32 %v127, 7
    %v129 = vsub.s32 0, %v128
    %v130 = vrot.slane %v125, %v129
    %132 = vmatprep.subr.mxu0 0.0
    %133 = vmatpush1.msra.mxu0 %v109
    %134 = vmatprep.subr.mxu0 0.0
    %135 = vmatpush1.msra.mxu0 %v110
    %136 = vmatprep.subr.mxu0 0.0
    %137 = vmatpush1.msra.mxu0 %v111
    %138 = vmatprep.subr.mxu0 0.0
    %139 = vmatpush1.msra.mxu0 %v112
    %140 = vmatprep.subr.mxu0 0.0
    %141 = vmatpush1.msra.mxu0 %v113
    %142 = vmatprep.subr.mxu0 0.0
    %143 = vmatpush1.msra.mxu0 %v114
    %144 = vmatprep.subr.mxu0 0.0
    %145 = vmatpush1.msra.mxu0 %v115
    %146 = vmatprep.subr.mxu0 0.0
    %147 = vmatpush1.msra.mxu0 %v116
    %148 = vmatprep.subr.mxu0 0.0
    %149 = vmatpush1.msra.mxu0 %v117
    %150 = vmatprep.subr.mxu0 0.0
    %151 = vmatpush1.msra.mxu0 %v118
    %152 = vmatprep.subr.mxu0 0.0
    %153 = vmatpush1.msra.mxu0 %v119
    %154 = vmatprep.subr.mxu0 0.0
    %155 = vmatpush1.msra.mxu0 %v120
    %156 = vmatprep.subr.mxu0 0.0
    %157 = vmatpush1.msra.mxu0 %v121
    %158 = vmatprep.subr.mxu0 0.0
    %159 = vmatpush1.msra.mxu0 %v122
    %160 = vmatprep.subr.mxu0 0.0
    %161 = vmatpush1.msra.mxu0 %v123
    %162 = vmatprep.subr.mxu0 0.0
    %163 = vmatpush1.msra.mxu0 %v124
    %164 = vmatprep.subr.mxu0 0.0
    %165 = vmatpush1.msra.mxu0 0.0
    %166 = vmatprep.subr.mxu0 0.0
    %167 = vmatpush1.msra.mxu0 0.0
    %168 = vmatprep.subr.mxu0 0.0
    %169 = vmatpush1.msra.mxu0 0.0
    %170 = vmatprep.subr.mxu0 0.0
    %171 = vmatpush1.msra.mxu0 0.0
    %172 = vmatprep.subr.mxu0 0.0
    %173 = vmatpush1.msra.mxu0 0.0
    %174 = vmatprep.subr.mxu0 0.0
    %175 = vmatpush1.msra.mxu0 0.0
    %176 = vmatprep.subr.mxu0 0.0
    %177 = vmatpush1.msra.mxu0 0.0
    %178 = vmatprep.subr.mxu0 0.0
    %179 = vmatpush1.msra.mxu0 0.0
    %180 = vmatprep.subr.mxu0 0.0
    %181 = vmatpush1.msra.mxu0 0.0
    %182 = vmatprep.subr.mxu0 0.0
    %183 = vmatpush1.msra.mxu0 0.0
    %184 = vmatprep.subr.mxu0 0.0
    %185 = vmatpush1.msra.mxu0 0.0
    %186 = vmatprep.subr.mxu0 0.0
    %187 = vmatpush1.msra.mxu0 0.0
    %188 = vmatprep.subr.mxu0 0.0
    %189 = vmatpush1.msra.mxu0 0.0
    %190 = vmatprep.subr.mxu0 0.0
    %191 = vmatpush1.msra.mxu0 0.0
    %192 = vmatprep.subr.mxu0 0.0
    %193 = vmatpush1.msra.mxu0 0.0
    %194 = vmatprep.subr.mxu0 0.0
    %195 = vmatpush1.msra.mxu0 0.0
    %196 = vmatprep.mubr.f32.mxu0 0.0
    %197 = vmatmul.mubr.f32.gmra.mrb[0].mxu0 %v108
    %v198 = vpop.f32.mrb[0].mxu0
    %v199 = vadd.f32 %v130, %v198
    %v200 = vpop.f32.mrb[0].mxu0
    %201 = vdwg.mxu0
    %vm202 = vcmask 64512
    %203 = vst.msk [vmem:[#allocation2] sm:$0xff] %vm202, %v199
    %v204 = vmax.f32 %v199, 0.0
    %v205 = vmin.f32 %v204, 10.0
    %207 = vrot.lane.b32.xlu0 %v205, 120
    %v208 = vpop.permute.xlu0 %207
    %210 = vst.msk [vmem:[#allocation4] sm:$0xff] %vm202, %v208
    // Predicated region
    $region22: #{tpu_custom_call.1} parent=1 // pred_check
      _
    $region23: #{tpu_custom_call.1} parent=1 // pred_check_branch
      %212 = sbr.rel (0) target = $region25
    $region24: #{tpu_custom_call.1} parent=1 // pred_region
      %s214 = ssub.s32 128, 32
      %215 = vsyncadd [#allocation3], %s214
      %s216 = sshll.u32 [#allocation2], 4
      %s217 = int_to_ptr.vmem [resolvable:$true] %s216
      %222 = dma.vmem_to_hbm [thread:$0]  %s217, 32, %s5, [#allocation3], 32, 32, 2
    $region25: #{tpu_custom_call.1} parent=1 // pred_fallthru
      _
    // Predicated region
    $region26: #{tpu_custom_call.1} parent=1 // pred_check
      _
    $region27: #{tpu_custom_call.1} parent=1 // pred_check_branch
      %224 = sbr.rel (0) target = $region29
    $region28: #{tpu_custom_call.1} parent=1 // pred_region
      %s226 = ssub.s32 128, 32
      %227 = vsyncadd [#allocation5], %s226
      %s228 = sshll.u32 [#allocation4], 4
      %s229 = int_to_ptr.vmem [resolvable:$true] %s228
      %234 = dma.vmem_to_hbm [thread:$0]  %s229, 32, %s6, [#allocation5], 32, 32, 2
    $region29: #{tpu_custom_call.1} parent=1 // pred_fallthru
      _
    // Predicated region
    $region30: #{tpu_custom_call.1} parent=1 // pred_check
      _
    $region31: #{tpu_custom_call.1} parent=1 // pred_check_branch
      %236 = sbr.rel (0) target = $region33
    $region32: #{tpu_custom_call.1} parent=1 // pred_region
      %237 = dma.done [#allocation3], 128
    $region33: #{tpu_custom_call.1} parent=1 // pred_fallthru
      _
    // Predicated region
    $region34: #{tpu_custom_call.1} parent=1 // pred_check
      _
    $region35: #{tpu_custom_call.1} parent=1 // pred_check_branch
      %239 = sbr.rel (0) target = $region37
    $region36: #{tpu_custom_call.1} parent=1 // pred_region
      %240 = dma.done [#allocation5], 128
    $region37: #{tpu_custom_call.1} parent=1 // pred_fallthru
      _
    %241 = vsyncpa [#allocation3], 1
    %242 = vsyncpa [#allocation5], 1

</llo_original>
